<compile_context>
chip_gen: v7x
topology: tpu7x:2x2x1
jax: 0.10.0
libtpu: 0.0.40
codegen_flags: <defaults>
</compile_context>

<pallas_src>
import jax
import jax.numpy as jnp
from jax.experimental import pallas as pl
from jax.experimental.pallas import tpu as pltpu

MIN_LOG_STD = -5.0
MAX_LOG_STD = 1.0


def _dynamics_kernel(s_ref, a_ref, w1_ref, b1_ref, w2_ref, b2_ref,
                     w3_ref, b3_ref, lo_ref, hi_ref, out_ref):
    # Fused 3-layer MLP: bf16 MXU inputs, f32 accumulation, f32 VPU epilogue.
    x = jnp.concatenate([s_ref[...], a_ref[...]], axis=-1).astype(jnp.bfloat16)

    h1 = jnp.dot(x, w1_ref[...], preferred_element_type=jnp.float32) + b1_ref[...]
    h1 = jnp.maximum(h1, 0.0)

    h2 = jnp.dot(h1.astype(jnp.bfloat16), w2_ref[...],
                 preferred_element_type=jnp.float32) + b2_ref[...]
    h2 = jnp.maximum(h2, 0.0)

    out = jnp.dot(h2.astype(jnp.bfloat16), w3_ref[...],
                  preferred_element_type=jnp.float32) + b3_ref[...]

    # Per-lane clamp: mean lanes have (-inf, +inf) bounds (pass-through),
    # log_std lanes have (min_log_std, max_log_std).  Two VPU ops total.
    out = jnp.minimum(jnp.maximum(out, lo_ref[...]), hi_ref[...])
    out_ref[...] = out.astype(out_ref.dtype)


def prepare_params(params):
    """Cast weights to bf16 (MXU inputs) and biases to f32 (VPU epilogue)."""
    w1, b1, w2, b2, w3, b3 = params
    return (w1.astype(jnp.bfloat16), b1.astype(jnp.float32),
            w2.astype(jnp.bfloat16), b2.astype(jnp.float32),
            w3.astype(jnp.bfloat16), b3.astype(jnp.float32))


def _round_up(x, m):
    return ((x + m - 1) // m) * m


def dynamics_forward(state, action, prepared_params,
                     min_log_std=MIN_LOG_STD, max_log_std=MAX_LOG_STD):
    """state: [B, S], action: [B, A] -> (mean [B, S], log_std [B, S])."""
    w1, b1, w2, b2, w3, b3 = prepared_params
    B, S = state.shape
    A = action.shape[1]
    H = w2.shape[0]
    out_dim = w3.shape[-1]          # 2 * S

    # Per-lane clamp bounds (resident (1, 2*S) f32 vectors).
    lane = jnp.arange(out_dim)
    lane_lo = jnp.where(lane >= S, min_log_std, -jnp.inf
                        ).astype(jnp.float32).reshape(1, out_dim)
    lane_hi = jnp.where(lane >= S, max_log_std, jnp.inf
                        ).astype(jnp.float32).reshape(1, out_dim)

    # Batch tiling by even splitting: tiles are multiples of 16 (bf16 sublane
    # packing); >=2 tiles for B>=32 so v7x's two TensorCores both get work.
    if B >= 32:
        n_tiles = max(2, pl.cdiv(B, 256))
    else:
        n_tiles = 1
    tile_b = _round_up(pl.cdiv(B, n_tiles), 16)
    b_pad = n_tiles * tile_b
    if b_pad != B:
        state = jnp.pad(state, ((0, b_pad - B), (0, 0)))
        action = jnp.pad(action, ((0, b_pad - B), (0, 0)))
    grid = (n_tiles,)

    resident = lambda arr: pl.BlockSpec(arr.shape, lambda i: (0, 0))

    weight_bytes = sum(int(p.size) * p.dtype.itemsize
                       for p in (w1, b1, w2, b2, w3, b3))
    cost = pl.CostEstimate(
        flops=2 * b_pad * ((S + A) * H + H * H + H * out_dim),
        transcendentals=0,
        bytes_accessed=(b_pad * (S + A) * 4 + weight_bytes
                        + b_pad * out_dim * 4),
    )

    out = pl.pallas_call(
        _dynamics_kernel,
        out_shape=jax.ShapeDtypeStruct((b_pad, out_dim), jnp.float32),
        grid=grid,
        in_specs=[
            pl.BlockSpec((tile_b, S), lambda i: (i, 0)),
            pl.BlockSpec((tile_b, A), lambda i: (i, 0)),
            resident(w1), resident(b1),
            resident(w2), resident(b2),
            resident(w3), resident(b3),
            resident(lane_lo), resident(lane_hi),
        ],
        out_specs=pl.BlockSpec((tile_b, out_dim), lambda i: (i, 0)),
        compiler_params=pltpu.CompilerParams(
            dimension_semantics=("parallel",)),
        cost_estimate=cost,
    )(state, action, w1, b1, w2, b2, w3, b3, lane_lo, lane_hi)

    mean = out[:B, :S]
    log_std = out[:B, S:]
    return mean, log_std


def init_params(key, state_dim, action_dim, hidden=128):
    """Deterministic init mimicking PyTorch Linear default (U[-1/sqrt(fan_in), +])."""
    in_dim = state_dim + action_dim
    out_dim = 2 * state_dim
    dims = [(in_dim, hidden), (hidden, hidden), (hidden, out_dim)]
    params = []
    for i, (fin, fout) in enumerate(dims):
        kw, kb = jax.random.split(jax.random.fold_in(key, i))
        bound = 1.0 / jnp.sqrt(fin)
        w = jax.random.uniform(kw, (fin, fout), jnp.float32, -bound, bound)
        b = jax.random.uniform(kb, (1, fout), jnp.float32, -bound, bound)
        params += [w, b]
    return tuple(params)


if __name__ == "__main__":
    key = jax.random.PRNGKey(0)
    state_dim, action_dim, batch = 8, 4, 8

    k_s, k_a, k_p = jax.random.split(key, 3)
    state = jax.random.normal(k_s, (batch, state_dim), jnp.float32)
    action = jax.random.normal(k_a, (batch, action_dim), jnp.float32)
    params = init_params(k_p, state_dim, action_dim)
    prepared = prepare_params(params)

    fwd = jax.jit(dynamics_forward)
    mean, log_std = fwd(state, action, prepared)
    jax.block_until_ready((mean, log_std))

    # sanity: shapes + clamp range
    assert mean.shape == (batch, state_dim)
    assert log_std.shape == (batch, state_dim)
    assert bool(jnp.all(log_std >= MIN_LOG_STD)) and bool(jnp.all(log_std <= MAX_LOG_STD))

    # cross-check against a pure-JAX reference of the same math (bf16 MXU
    # inputs, f32 accumulation), matching the kernel's precision choices.
    w1, b1, w2, b2, w3, b3 = params
    x = jnp.concatenate([state, action], axis=-1)
    h = jnp.maximum(jnp.dot(x.astype(jnp.bfloat16), w1.astype(jnp.bfloat16),
                            preferred_element_type=jnp.float32) + b1, 0.0)
    h = jnp.maximum(jnp.dot(h.astype(jnp.bfloat16), w2.astype(jnp.bfloat16),
                            preferred_element_type=jnp.float32) + b2, 0.0)
    out = jnp.dot(h.astype(jnp.bfloat16), w3.astype(jnp.bfloat16),
                  preferred_element_type=jnp.float32) + b3
    ref_mean = out[:, :state_dim]
    ref_log_std = jnp.clip(out[:, state_dim:], MIN_LOG_STD, MAX_LOG_STD)
    assert jnp.allclose(mean, ref_mean, atol=2e-3, rtol=1e-3)
    assert jnp.allclose(log_std, ref_log_std, atol=2e-3, rtol=1e-3)

    print("KERNEL_OK")
</pallas_src>

<mosaic_0001>
module attributes {stable_mosaic.version = 11 : i64} {
  func.func @_dynamics_kernel(%arg0: i32, %arg1: memref<16x8xf32, #tpu.memory_space<vmem>>, %arg2: memref<16x4xf32, #tpu.memory_space<vmem>>, %arg3: memref<12x128xbf16, #tpu.memory_space<vmem>>, %arg4: memref<1x128xf32, #tpu.memory_space<vmem>>, %arg5: memref<128x128xbf16, #tpu.memory_space<vmem>>, %arg6: memref<1x128xf32, #tpu.memory_space<vmem>>, %arg7: memref<128x16xbf16, #tpu.memory_space<vmem>>, %arg8: memref<1x16xf32, #tpu.memory_space<vmem>>, %arg9: memref<1x16xf32, #tpu.memory_space<vmem>>, %arg10: memref<1x16xf32, #tpu.memory_space<vmem>>, %arg11: memref<16x16xf32, #tpu.memory_space<vmem>>) attributes {dimension_semantics = [#tpu.dimension_semantics<parallel>], iteration_bounds = array<i64: 1>, scalar_prefetch = 0 : i64, scratch_operands = 0 : i64, tpu.core_type = #tpu.core_type<tc>, window_params = [{transform_indices = @transform_0, window_bounds = array<i64: 16, 8>}, {transform_indices = @transform_1, window_bounds = array<i64: 16, 4>}, {pipeline_mode = #tpu.pipeline_mode<synchronous>, transform_indices = @transform_2, window_bounds = array<i64: 12, 128>}, {pipeline_mode = #tpu.pipeline_mode<synchronous>, transform_indices = @transform_3, window_bounds = array<i64: 1, 128>}, {pipeline_mode = #tpu.pipeline_mode<synchronous>, transform_indices = @transform_4, window_bounds = array<i64: 128, 128>}, {pipeline_mode = #tpu.pipeline_mode<synchronous>, transform_indices = @transform_5, window_bounds = array<i64: 1, 128>}, {pipeline_mode = #tpu.pipeline_mode<synchronous>, transform_indices = @transform_6, window_bounds = array<i64: 128, 16>}, {pipeline_mode = #tpu.pipeline_mode<synchronous>, transform_indices = @transform_7, window_bounds = array<i64: 1, 16>}, {pipeline_mode = #tpu.pipeline_mode<synchronous>, transform_indices = @transform_8, window_bounds = array<i64: 1, 16>}, {pipeline_mode = #tpu.pipeline_mode<synchronous>, transform_indices = @transform_9, window_bounds = array<i64: 1, 16>}, {transform_indices = @transform_10, window_bounds = array<i64: 16, 16>}]} {
    %c0 = arith.constant 0 : index
    %c0_0 = arith.constant 0 : index
    %0 = vector.load %arg1[%c0, %c0_0] : memref<16x8xf32, #tpu.memory_space<vmem>>, vector<16x8xf32>
    %c0_1 = arith.constant 0 : index
    %c0_2 = arith.constant 0 : index
    %1 = vector.load %arg2[%c0_1, %c0_2] : memref<16x4xf32, #tpu.memory_space<vmem>>, vector<16x4xf32>
    %2 = tpu.concatenate %0, %1 in 1 : vector<16x8xf32>, vector<16x4xf32> -> vector<16x12xf32>
    %3 = arith.truncf %2 : vector<16x12xf32> to vector<16x12xbf16>
    %c0_3 = arith.constant 0 : index
    %c0_4 = arith.constant 0 : index
    %4 = vector.load %arg3[%c0_3, %c0_4] : memref<12x128xbf16, #tpu.memory_space<vmem>>, vector<12x128xbf16>
    %cst = arith.constant dense<0.000000e+00> : vector<16x128xf32>
    %5 = tpu.matmul %3, %4, %cst {dimension_numbers = #tpu.dot_dimension_numbers<[1], [0], [0], [1], [0, 0, 1, 1], [], []>} : vector<16x12xbf16>, vector<12x128xbf16>, vector<16x128xf32> -> vector<16x128xf32>
    %c0_5 = arith.constant 0 : index
    %c0_6 = arith.constant 0 : index
    %6 = vector.load %arg4[%c0_5, %c0_6] : memref<1x128xf32, #tpu.memory_space<vmem>>, vector<1x128xf32>
    %7 = vector.broadcast %6 : vector<1x128xf32> to vector<16x128xf32>
    %8 = arith.addf %5, %7 : vector<16x128xf32>
    %cst_7 = arith.constant 0.000000e+00 : f32
    %9 = vector.broadcast %cst_7 : f32 to vector<16x128xf32>
    %10 = arith.maximumf %8, %9 : vector<16x128xf32>
    %11 = arith.truncf %10 : vector<16x128xf32> to vector<16x128xbf16>
    %c0_8 = arith.constant 0 : index
    %c0_9 = arith.constant 0 : index
    %12 = vector.load %arg5[%c0_8, %c0_9] : memref<128x128xbf16, #tpu.memory_space<vmem>>, vector<128x128xbf16>
    %cst_10 = arith.constant dense<0.000000e+00> : vector<16x128xf32>
    %13 = tpu.matmul %11, %12, %cst_10 {dimension_numbers = #tpu.dot_dimension_numbers<[1], [0], [0], [1], [0, 0, 1, 1], [], []>} : vector<16x128xbf16>, vector<128x128xbf16>, vector<16x128xf32> -> vector<16x128xf32>
    %c0_11 = arith.constant 0 : index
    %c0_12 = arith.constant 0 : index
    %14 = vector.load %arg6[%c0_11, %c0_12] : memref<1x128xf32, #tpu.memory_space<vmem>>, vector<1x128xf32>
    %15 = vector.broadcast %14 : vector<1x128xf32> to vector<16x128xf32>
    %16 = arith.addf %13, %15 : vector<16x128xf32>
    %cst_13 = arith.constant 0.000000e+00 : f32
    %17 = vector.broadcast %cst_13 : f32 to vector<16x128xf32>
    %18 = arith.maximumf %16, %17 : vector<16x128xf32>
    %19 = arith.truncf %18 : vector<16x128xf32> to vector<16x128xbf16>
    %c0_14 = arith.constant 0 : index
    %c0_15 = arith.constant 0 : index
    %20 = vector.load %arg7[%c0_14, %c0_15] : memref<128x16xbf16, #tpu.memory_space<vmem>>, vector<128x16xbf16>
    %cst_16 = arith.constant dense<0.000000e+00> : vector<16x16xf32>
    %21 = tpu.matmul %19, %20, %cst_16 {dimension_numbers = #tpu.dot_dimension_numbers<[1], [0], [0], [1], [0, 0, 1, 1], [], []>} : vector<16x128xbf16>, vector<128x16xbf16>, vector<16x16xf32> -> vector<16x16xf32>
    %c0_17 = arith.constant 0 : index
    %c0_18 = arith.constant 0 : index
    %22 = vector.load %arg8[%c0_17, %c0_18] : memref<1x16xf32, #tpu.memory_space<vmem>>, vector<1x16xf32>
    %23 = vector.broadcast %22 : vector<1x16xf32> to vector<16x16xf32>
    %24 = arith.addf %21, %23 : vector<16x16xf32>
    %c0_19 = arith.constant 0 : index
    %c0_20 = arith.constant 0 : index
    %25 = vector.load %arg9[%c0_19, %c0_20] : memref<1x16xf32, #tpu.memory_space<vmem>>, vector<1x16xf32>
    %26 = vector.broadcast %25 : vector<1x16xf32> to vector<16x16xf32>
    %27 = arith.maximumf %24, %26 : vector<16x16xf32>
    %c0_21 = arith.constant 0 : index
    %c0_22 = arith.constant 0 : index
    %28 = vector.load %arg10[%c0_21, %c0_22] : memref<1x16xf32, #tpu.memory_space<vmem>>, vector<1x16xf32>
    %29 = vector.broadcast %28 : vector<1x16xf32> to vector<16x16xf32>
    %30 = arith.minimumf %27, %29 : vector<16x16xf32>
    %c0_23 = arith.constant 0 : index
    %c0_24 = arith.constant 0 : index
    %31 = vector.load %arg11[%c0_23, %c0_24] : memref<16x16xf32, #tpu.memory_space<vmem>>, vector<16x16xf32>
    tpu.vector_store %arg11[%c0_23, %c0_24], %30 {strides = array<i32>} : memref<16x16xf32, #tpu.memory_space<vmem>>, vector<16x16xf32>,
    return
  }
  func.func @transform_0(%arg0: i32) -> (i32, i32) {
    %c0_i32 = arith.constant 0 : i32
    %c0_i32_0 = arith.constant 0 : i32
    return %arg0, %c0_i32 : i32, i32
  }
  func.func @transform_1(%arg0: i32) -> (i32, i32) {
    %c0_i32 = arith.constant 0 : i32
    %c0_i32_0 = arith.constant 0 : i32
    return %arg0, %c0_i32 : i32, i32
  }
  func.func @transform_2(%arg0: i32) -> (i32, i32) {
    %c0_i32 = arith.constant 0 : i32
    %c0_i32_0 = arith.constant 0 : i32
    %c0_i32_1 = arith.constant 0 : i32
    return %c0_i32, %c0_i32_0 : i32, i32
  }
  func.func @transform_3(%arg0: i32) -> (i32, i32) {
    %c0_i32 = arith.constant 0 : i32
    %c0_i32_0 = arith.constant 0 : i32
    %c0_i32_1 = arith.constant 0 : i32
    return %c0_i32, %c0_i32_0 : i32, i32
  }
  func.func @transform_4(%arg0: i32) -> (i32, i32) {
    %c0_i32 = arith.constant 0 : i32
    %c0_i32_0 = arith.constant 0 : i32
    %c0_i32_1 = arith.constant 0 : i32
    return %c0_i32, %c0_i32_0 : i32, i32
  }
  func.func @transform_5(%arg0: i32) -> (i32, i32) {
    %c0_i32 = arith.constant 0 : i32
    %c0_i32_0 = arith.constant 0 : i32
    %c0_i32_1 = arith.constant 0 : i32
    return %c0_i32, %c0_i32_0 : i32, i32
  }
  func.func @transform_6(%arg0: i32) -> (i32, i32) {
    %c0_i32 = arith.constant 0 : i32
    %c0_i32_0 = arith.constant 0 : i32
    %c0_i32_1 = arith.constant 0 : i32
    return %c0_i32, %c0_i32_0 : i32, i32
  }
  func.func @transform_7(%arg0: i32) -> (i32, i32) {
    %c0_i32 = arith.constant 0 : i32
    %c0_i32_0 = arith.constant 0 : i32
    %c0_i32_1 = arith.constant 0 : i32
    return %c0_i32, %c0_i32_0 : i32, i32
  }
  func.func @transform_8(%arg0: i32) -> (i32, i32) {
    %c0_i32 = arith.constant 0 : i32
    %c0_i32_0 = arith.constant 0 : i32
    %c0_i32_1 = arith.constant 0 : i32
    return %c0_i32, %c0_i32_0 : i32, i32
  }
  func.func @transform_9(%arg0: i32) -> (i32, i32) {
    %c0_i32 = arith.constant 0 : i32
    %c0_i32_0 = arith.constant 0 : i32
    %c0_i32_1 = arith.constant 0 : i32
    return %c0_i32, %c0_i32_0 : i32, i32
  }
  func.func @transform_10(%arg0: i32) -> (i32, i32) {
    %c0_i32 = arith.constant 0 : i32
    %c0_i32_0 = arith.constant 0 : i32
    return %arg0, %c0_i32 : i32, i32
  }
}

</mosaic_0001>

<llo_original>
// kernel: dynamics_forward.1
$region0: #{dynamics_forward.1}
  #allocation0 [shape = 'u32[]', space=smem, size = 0x4, offset = 0x4, fixed_abs, tag = 'smem constant byte address 0x4 - core index']
  #allocation1 [shape = 'u32[144,128]{1,0:T(1,128)}', space=vmem, size = 0x12000, scoped, tag = 'internal scratch']
  %s0 = inlined_call_operand.vmem [shape: f32[16,8], index: 0, kind: input, shape index: {}]
  %s1 = inlined_call_operand.vmem [shape: f32[16,4], index: 1, kind: input, shape index: {}]
  %s2 = inlined_call_operand.vmem [shape: bf16[12,128], index: 2, kind: input, shape index: {}]
  %s3 = inlined_call_operand.vmem [shape: f32[1,128], index: 3, kind: input, shape index: {}]
  %s4 = inlined_call_operand.vmem [shape: bf16[128,128], index: 4, kind: input, shape index: {}]
  %s5 = inlined_call_operand.vmem [shape: f32[1,128], index: 5, kind: input, shape index: {}]
  %s6 = inlined_call_operand.vmem [shape: bf16[128,16], index: 6, kind: input, shape index: {}]
  %s7 = inlined_call_operand.vmem [shape: f32[1,16], index: 7, kind: input, shape index: {}]
  %s8 = inlined_call_operand.vmem [shape: f32[1,16], index: 8, kind: input, shape index: {}]
  %s9 = inlined_call_operand.vmem [shape: f32[1,16], index: 9, kind: input, shape index: {}]
  %s10 = inlined_call_operand.vmem [shape: f32[16,16], index: 10, kind: output, shape index: {}]
  %s11 = sld [smem:[#allocation0]]
  $region50: #{dynamics_forward.1} parent=0
    _
  %s13 = ssub.s32 1, %s11
  %s14 = scalar_select 0, %s13, %s11
  // Predicated region
  $region2: #{dynamics_forward.1} parent=0 // pred_check
    _
  $region3: #{dynamics_forward.1} parent=0 // pred_check_branch
    %16 = sbr.rel (0) target = $region5
  $region4: #{dynamics_forward.1} parent=0 // pred_region
    _
  $region5: #{dynamics_forward.1} parent=0 // pred_fallthru
    _
  // Predicated region
  $region6: #{dynamics_forward.1} parent=0 // pred_check
    _
  $region7: #{dynamics_forward.1} parent=0 // pred_check_branch
    %18 = sbr.rel (0) target = $region9
  $region8: #{dynamics_forward.1} parent=0 // pred_region
    _
  $region9: #{dynamics_forward.1} parent=0 // pred_fallthru
    _
  // Predicated region
  $region10: #{dynamics_forward.1} parent=0 // pred_check
    _
  $region11: #{dynamics_forward.1} parent=0 // pred_check_branch
    %20 = sbr.rel (0) target = $region13
  $region12: #{dynamics_forward.1} parent=0 // pred_region
    _
  $region13: #{dynamics_forward.1} parent=0 // pred_fallthru
    _
  // Predicated region
  $region14: #{dynamics_forward.1} parent=0 // pred_check
    _
  $region15: #{dynamics_forward.1} parent=0 // pred_check_branch
    %22 = sbr.rel (0) target = $region17
  $region16: #{dynamics_forward.1} parent=0 // pred_region
    _
  $region17: #{dynamics_forward.1} parent=0 // pred_fallthru
    _
  // Predicated region
  $region18: #{dynamics_forward.1} parent=0 // pred_check
    _
  $region19: #{dynamics_forward.1} parent=0 // pred_check_branch
    %24 = sbr.rel (0) target = $region21
  $region20: #{dynamics_forward.1} parent=0 // pred_region
    _
  $region21: #{dynamics_forward.1} parent=0 // pred_fallthru
    _
  // Predicated region
  $region22: #{dynamics_forward.1} parent=0 // pred_check
    _
  $region23: #{dynamics_forward.1} parent=0 // pred_check_branch
    %26 = sbr.rel (0) target = $region25
  $region24: #{dynamics_forward.1} parent=0 // pred_region
    _
  $region25: #{dynamics_forward.1} parent=0 // pred_fallthru
    _
  // Predicated region
  $region26: #{dynamics_forward.1} parent=0 // pred_check
    _
  $region27: #{dynamics_forward.1} parent=0 // pred_check_branch
    %28 = sbr.rel (0) target = $region29
  $region28: #{dynamics_forward.1} parent=0 // pred_region
    _
  $region29: #{dynamics_forward.1} parent=0 // pred_fallthru
    _
  // Predicated region
  $region30: #{dynamics_forward.1} parent=0 // pred_check
    _
  $region31: #{dynamics_forward.1} parent=0 // pred_check_branch
    %30 = sbr.rel (0) target = $region33
  $region32: #{dynamics_forward.1} parent=0 // pred_region
    _
  $region33: #{dynamics_forward.1} parent=0 // pred_fallthru
    _
  // Predicated region
  $region34: #{dynamics_forward.1} parent=0 // pred_check
    _
  $region35: #{dynamics_forward.1} parent=0 // pred_check_branch
    %32 = sbr.rel (0) target = $region37
  $region36: #{dynamics_forward.1} parent=0 // pred_region
    _
  $region37: #{dynamics_forward.1} parent=0 // pred_fallthru
    _
  // Predicated region
  $region38: #{dynamics_forward.1} parent=0 // pred_check
    _
  $region39: #{dynamics_forward.1} parent=0 // pred_check_branch
    %34 = sbr.rel (0) target = $region41
  $region40: #{dynamics_forward.1} parent=0 // pred_region
    _
  $region41: #{dynamics_forward.1} parent=0 // pred_fallthru
    _
  %v36 = vld [vmem:[%s0] sm:$0xff]
  %v37 = vld [vmem:[%s0 + $0x8] sm:$0xff]
  %v38 = vld [vmem:[%s1] sm:$0xff]
  %v39 = vld [vmem:[%s1 + $0x8] sm:$0xff]
  %42 = vrot.lane.b32.xlu0 %v38, 8
  %v43 = vpop.permute.xlu0 %42
  %44 = vrot.lane.b32.xlu0 %v39, 8
  %v45 = vpop.permute.xlu0 %44
  %vm48 = vcmask 64512
  %v49 = vsel %vm48, %v36, %v43
  %v50 = vsel %vm48, %v37, %v45
  %v51 = vpack.c.bf16 %v50, %v49
  %v52 = vld [vmem:[%s2] sm:$0xf]
  %v53 = vld [vmem:[%s2 + $0x4] sm:$0x3]
  %v54 = vld [vmem:[%s3] sm:$0x1]
  %v56 = vlaneseq
  %v57 = vshrl.u32 %v56, 7
  %v58 = vsub.s32 0, %v57
  %v59 = vrot.slane %v54, %v58
  %v63 = vunpack.c.l.b16 %v52
  %v64 = vunpack.c.l.b16 %v53
  %v65 = vpack.c.b16 %v64, %v63
  %vm66 = vcmask 97280
  %v68 = vsel %vm66, %v51, 0
  %vm70 = vcmask 1045504
  %v72 = vsel %vm70, %v65, 0
  %74 = vmatprep.subr.bf16.mxu0 0
  %75 = vmatpush1.bf16.msra.mxu0 %v72
  %76 = vmatprep.subr.bf16.mxu0 0
  %77 = vmatpush1.bf16.msra.mxu0 0
  %78 = vmatprep.subr.bf16.mxu0 0
  %79 = vmatpush1.bf16.msra.mxu0 0
  %80 = vmatprep.subr.bf16.mxu0 0
  %81 = vmatpush1.bf16.msra.mxu0 0
  %82 = vmatprep.subr.bf16.mxu0 0
  %83 = vmatpush1.bf16.msra.mxu0 0
  %84 = vmatprep.subr.bf16.mxu0 0
  %85 = vmatpush1.bf16.msra.mxu0 0
  %86 = vmatprep.subr.bf16.mxu0 0
  %87 = vmatpush1.bf16.msra.mxu0 0
  %88 = vmatprep.subr.bf16.mxu0 0
  %89 = vmatpush1.bf16.msra.mxu0 0
  %90 = vmatprep.subr.bf16.mxu0 0
  %91 = vmatpush1.bf16.msra.mxu0 0
  %92 = vmatprep.subr.bf16.mxu0 0
  %93 = vmatpush1.bf16.msra.mxu0 0
  %94 = vmatprep.subr.bf16.mxu0 0
  %95 = vmatpush1.bf16.msra.mxu0 0
  %96 = vmatprep.subr.bf16.mxu0 0
  %97 = vmatpush1.bf16.msra.mxu0 0
  %98 = vmatprep.subr.bf16.mxu0 0
  %99 = vmatpush1.bf16.msra.mxu0 0
  %100 = vmatprep.subr.bf16.mxu0 0
  %101 = vmatpush1.bf16.msra.mxu0 0
  %102 = vmatprep.subr.bf16.mxu0 0
  %103 = vmatpush1.bf16.msra.mxu0 0
  %104 = vmatprep.subr.bf16.mxu0 0
  %105 = vmatpush1.bf16.msra.mxu0 0
  %106 = vmatprep.mubr.bf16.mxu0 0
  %107 = vmatmul.mubr.bf16.gmra.mrb[0].mxu0 %v68
  %v108 = vpop.f32.mrb[0].mxu0
  %v109 = vadd.f32 %v59, %v108
  %v110 = vpop.f32.mrb[0].mxu0
  %v111 = vpop.f32.mrb[0].mxu0
  %v112 = vadd.f32 %v59, %v111
  %v113 = vpop.f32.mrb[0].mxu0
  %114 = vdwg.mxu0
  %v115 = vmax.f32 %v109, 0.0
  %v116 = vmax.f32 %v112, 0.0
  %v117 = vpack.c.bf16 %v116, %v115
  %v118 = vld [vmem:[%s4] sm:$0xf]
  %v119 = vld [vmem:[%s4 + $0x4] sm:$0xf]
  %v120 = vld [vmem:[%s4 + $0x8] sm:$0xf]
  %v121 = vld [vmem:[%s4 + $0xc] sm:$0xf]
  %v122 = vld [vmem:[%s4 + $0x10] sm:$0xf]
  %v123 = vld [vmem:[%s4 + $0x14] sm:$0xf]
  %v124 = vld [vmem:[%s4 + $0x18] sm:$0xf]
  %v125 = vld [vmem:[%s4 + $0x1c] sm:$0xf]
  %v126 = vld [vmem:[%s4 + $0x20] sm:$0xf]
  %v127 = vld [vmem:[%s4 + $0x24] sm:$0xf]
  %v128 = vld [vmem:[%s4 + $0x28] sm:$0xf]
  %v129 = vld [vmem:[%s4 + $0x2c] sm:$0xf]
  %v130 = vld [vmem:[%s4 + $0x30] sm:$0xf]
  %v131 = vld [vmem:[%s4 + $0x34] sm:$0xf]
  %v132 = vld [vmem:[%s4 + $0x38] sm:$0xf]
  %v133 = vld [vmem:[%s4 + $0x3c] sm:$0xf]
  %v134 = vld [vmem:[%s5] sm:$0x1]
  %v136 = vlaneseq
  %v137 = vshrl.u32 %v136, 7
  %v138 = vsub.s32 0, %v137
  %v139 = vrot.slane %v134, %v138
  %v157 = vunpack.c.l.b16 %v118
  %v158 = vunpack.c.l.b16 %v119
  %v159 = vunpack.c.l.b16 %v120
  %v160 = vunpack.c.l.b16 %v121
  %v161 = vunpack.c.l.b16 %v122
  %v162 = vunpack.c.l.b16 %v123
  %v163 = vunpack.c.l.b16 %v124
  %v164 = vunpack.c.l.b16 %v125
  %v165 = vunpack.c.l.b16 %v126
  %v166 = vunpack.c.l.b16 %v127
  %v167 = vunpack.c.l.b16 %v128
  %v168 = vunpack.c.l.b16 %v129
  %v169 = vunpack.c.l.b16 %v130
  %v170 = vunpack.c.l.b16 %v131
  %v171 = vunpack.c.l.b16 %v132
  %v172 = vunpack.c.l.b16 %v133
  %v173 = vpack.c.b16 %v158, %v157
  %v174 = vpack.c.b16 %v160, %v159
  %v175 = vpack.c.b16 %v162, %v161
  %v176 = vpack.c.b16 %v164, %v163
  %v177 = vpack.c.b16 %v166, %v165
  %v178 = vpack.c.b16 %v168, %v167
  %v179 = vpack.c.b16 %v170, %v169
  %v180 = vpack.c.b16 %v172, %v171
  %189 = vmatprep.subr.bf16.mxu0 0
  %190 = vmatpush1.bf16.msra.mxu0 %v173
  %191 = vmatprep.subr.bf16.mxu0 0
  %192 = vmatpush1.bf16.msra.mxu0 %v174
  %193 = vmatprep.subr.bf16.mxu0 0
  %194 = vmatpush1.bf16.msra.mxu0 %v175
  %195 = vmatprep.subr.bf16.mxu0 0
  %196 = vmatpush1.bf16.msra.mxu0 %v176
  %197 = vmatprep.subr.bf16.mxu0 0
  %198 = vmatpush1.bf16.msra.mxu0 %v177
  %199 = vmatprep.subr.bf16.mxu0 0
  %200 = vmatpush1.bf16.msra.mxu0 %v178
  %201 = vmatprep.subr.bf16.mxu0 0
  %202 = vmatpush1.bf16.msra.mxu0 %v179
  %203 = vmatprep.subr.bf16.mxu0 0
  %204 = vmatpush1.bf16.msra.mxu0 %v180
  %205 = vmatprep.subr.bf16.mxu0 0
  %206 = vmatpush1.bf16.msra.mxu0 0
  %207 = vmatprep.subr.bf16.mxu0 0
  %208 = vmatpush1.bf16.msra.mxu0 0
  %209 = vmatprep.subr.bf16.mxu0 0
  %210 = vmatpush1.bf16.msra.mxu0 0
  %211 = vmatprep.subr.bf16.mxu0 0
  %212 = vmatpush1.bf16.msra.mxu0 0
  %213 = vmatprep.subr.bf16.mxu0 0
  %214 = vmatpush1.bf16.msra.mxu0 0
  %215 = vmatprep.subr.bf16.mxu0 0
  %216 = vmatpush1.bf16.msra.mxu0 0
  %217 = vmatprep.subr.bf16.mxu0 0
  %218 = vmatpush1.bf16.msra.mxu0 0
  %219 = vmatprep.subr.bf16.mxu0 0
  %220 = vmatpush1.bf16.msra.mxu0 0
  %221 = vmatprep.mubr.bf16.mxu0 0
  %222 = vmatmul.mubr.bf16.gmra.mrb[0].mxu0 %v117
  %v223 = vpop.f32.mrb[0].mxu0
  %v224 = vadd.f32 %v139, %v223
  %v225 = vpop.f32.mrb[0].mxu0
  %v226 = vpop.f32.mrb[0].mxu0
  %v227 = vadd.f32 %v139, %v226
  %v228 = vpop.f32.mrb[0].mxu0
  %229 = vdwg.mxu0
  %v230 = vmax.f32 %v224, 0.0
  %v231 = vmax.f32 %v227, 0.0
  %v232 = vpack.c.bf16 %v231, %v230
  %v233 = vld [vmem:[%s6] sm:$0xf]
  %v234 = vld [vmem:[%s6 + $0x4] sm:$0xf]
  %v235 = vld [vmem:[%s6 + $0x8] sm:$0xf]
  %v236 = vld [vmem:[%s6 + $0xc] sm:$0xf]
  %v237 = vld [vmem:[%s6 + $0x10] sm:$0xf]
  %v238 = vld [vmem:[%s6 + $0x14] sm:$0xf]
  %v239 = vld [vmem:[%s6 + $0x18] sm:$0xf]
  %v240 = vld [vmem:[%s6 + $0x1c] sm:$0xf]
  %v241 = vld [vmem:[%s6 + $0x20] sm:$0xf]
  %v242 = vld [vmem:[%s6 + $0x24] sm:$0xf]
  %v243 = vld [vmem:[%s6 + $0x28] sm:$0xf]
  %v244 = vld [vmem:[%s6 + $0x2c] sm:$0xf]
  %v245 = vld [vmem:[%s6 + $0x30] sm:$0xf]
  %v246 = vld [vmem:[%s6 + $0x34] sm:$0xf]
  %v247 = vld [vmem:[%s6 + $0x38] sm:$0xf]
  %v248 = vld [vmem:[%s6 + $0x3c] sm:$0xf]
  %v249 = vld [vmem:[%s7] sm:$0x1]
  %v251 = vlaneseq
  %v252 = vshrl.u32 %v251, 7
  %v253 = vsub.s32 0, %v252
  %v254 = vrot.slane %v249, %v253
  %v272 = vunpack.c.l.b16 %v233
  %v273 = vunpack.c.l.b16 %v234
  %v274 = vunpack.c.l.b16 %v235
  %v275 = vunpack.c.l.b16 %v236
  %v276 = vunpack.c.l.b16 %v237
  %v277 = vunpack.c.l.b16 %v238
  %v278 = vunpack.c.l.b16 %v239
  %v279 = vunpack.c.l.b16 %v240
  %v280 = vunpack.c.l.b16 %v241
  %v281 = vunpack.c.l.b16 %v242
  %v282 = vunpack.c.l.b16 %v243
  %v283 = vunpack.c.l.b16 %v244
  %v284 = vunpack.c.l.b16 %v245
  %v285 = vunpack.c.l.b16 %v246
  %v286 = vunpack.c.l.b16 %v247
  %v287 = vunpack.c.l.b16 %v248
  %v288 = vpack.c.b16 %v273, %v272
  %v289 = vpack.c.b16 %v275, %v274
  %v290 = vpack.c.b16 %v277, %v276
  %v291 = vpack.c.b16 %v279, %v278
  %v292 = vpack.c.b16 %v281, %v280
  %v293 = vpack.c.b16 %v283, %v282
  %v294 = vpack.c.b16 %v285, %v284
  %v295 = vpack.c.b16 %v287, %v286
  %304 = vmatprep.subr.bf16.mxu0 0
  %305 = vmatpush1.bf16.msra.mxu0 %v288
  %306 = vmatprep.subr.bf16.mxu0 0
  %307 = vmatpush1.bf16.msra.mxu0 %v289
  %308 = vmatprep.subr.bf16.mxu0 0
  %309 = vmatpush1.bf16.msra.mxu0 %v290
  %310 = vmatprep.subr.bf16.mxu0 0
  %311 = vmatpush1.bf16.msra.mxu0 %v291
  %312 = vmatprep.subr.bf16.mxu0 0
  %313 = vmatpush1.bf16.msra.mxu0 %v292
  %314 = vmatprep.subr.bf16.mxu0 0
  %315 = vmatpush1.bf16.msra.mxu0 %v293
  %316 = vmatprep.subr.bf16.mxu0 0
  %317 = vmatpush1.bf16.msra.mxu0 %v294
  %318 = vmatprep.subr.bf16.mxu0 0
  %319 = vmatpush1.bf16.msra.mxu0 %v295
  %320 = vmatprep.subr.bf16.mxu0 0
  %321 = vmatpush1.bf16.msra.mxu0 0
  %322 = vmatprep.subr.bf16.mxu0 0
  %323 = vmatpush1.bf16.msra.mxu0 0
  %324 = vmatprep.subr.bf16.mxu0 0
  %325 = vmatpush1.bf16.msra.mxu0 0
  %326 = vmatprep.subr.bf16.mxu0 0
  %327 = vmatpush1.bf16.msra.mxu0 0
  %328 = vmatprep.subr.bf16.mxu0 0
  %329 = vmatpush1.bf16.msra.mxu0 0
  %330 = vmatprep.subr.bf16.mxu0 0
  %331 = vmatpush1.bf16.msra.mxu0 0
  %332 = vmatprep.subr.bf16.mxu0 0
  %333 = vmatpush1.bf16.msra.mxu0 0
  %334 = vmatprep.subr.bf16.mxu0 0
  %335 = vmatpush1.bf16.msra.mxu0 0
  %336 = vmatprep.mubr.bf16.mxu0 0
  %337 = vmatmul.mubr.bf16.gmra.mrb[0].mxu0 %v232
  %v338 = vpop.f32.mrb[0].mxu0
  %v339 = vadd.f32 %v254, %v338
  %v340 = vpop.f32.mrb[0].mxu0
  %v341 = vpop.f32.mrb[0].mxu0
  %v342 = vadd.f32 %v254, %v341
  %v343 = vpop.f32.mrb[0].mxu0
  %344 = vdwg.mxu0
  %v345 = vld [vmem:[%s8] sm:$0x1]
  %v347 = vlaneseq
  %v348 = vshrl.u32 %v347, 7
  %v349 = vsub.s32 0, %v348
  %v350 = vrot.slane %v345, %v349
  %v352 = vmax.f32 %v339, %v350
  %v353 = vmax.f32 %v342, %v350
  %v354 = vld [vmem:[%s9] sm:$0x1]
  %v356 = vlaneseq
  %v357 = vshrl.u32 %v356, 7
  %v358 = vsub.s32 0, %v357
  %v359 = vrot.slane %v354, %v358
  %v361 = vmin.f32 %v352, %v359
  %v362 = vmin.f32 %v353, %v359
  %vm363 = vcmask 130048
  %364 = vst.msk [vmem:[%s10] sm:$0xff] %vm363, %v361
  %365 = vst.msk [vmem:[%s10 + $0x8] sm:$0xff] %vm363, %v362
  // Predicated region
  $region42: #{dynamics_forward.1} parent=0 // pred_check
    _
  $region43: #{dynamics_forward.1} parent=0 // pred_check_branch
    %367 = sbr.rel (0) target = $region45
  $region44: #{dynamics_forward.1} parent=0 // pred_region
    _
  $region45: #{dynamics_forward.1} parent=0 // pred_fallthru
    _
  // Predicated region
  $region46: #{dynamics_forward.1} parent=0 // pred_check
    _
  $region47: #{dynamics_forward.1} parent=0 // pred_check_branch
    %369 = sbr.rel (0) target = $region49
  $region48: #{dynamics_forward.1} parent=0 // pred_region
    _
  $region49: #{dynamics_forward.1} parent=0 // pred_fallthru
    _

</llo_original>
